<compile_context>
chip_gen: v7x
topology: tpu7x:2x2x1
jax: 0.10.0
libtpu: 0.0.40
codegen_flags: <defaults>
</compile_context>

<pallas_src>
import functools

import jax
import jax.numpy as jnp
from jax.experimental import pallas as pl
from jax.experimental.pallas import tpu as pltpu


def _message_passing_kernel(x_ref, a_ref, mask_ref, w_ref, o_ref):
    # x_ref    : (Bt, N, Fin)     compute dtype
    # a_ref    : (Bt, N, N)       compute dtype (edge-type-0 adjacency)
    # mask_ref : (Bt, N, 1)       float32
    # w_ref    : (Fin, Fout_p)    compute dtype (W.T, lane-padded)
    # o_ref    : (Bt, N, Fout_p)  float32
    bt, n, fin = x_ref.shape
    fout_p = w_ref.shape[1]

    x = x_ref[...]
    a = a_ref[...]
    w = w_ref[...]

    # Linear projection: fold all Bt graphs into the M dimension -> one big
    # MXU matmul instead of Bt tiny ones.  f32 accumulation.
    h = jnp.dot(x.reshape(bt * n, fin), w,
                preferred_element_type=jnp.float32)           # (Bt*N, Fout_p)
    h = h.reshape(bt, n, fout_p)                              # f32

    # (A + I) @ h == A @ h + h : skip building the identity / A_hat tile.
    agg = jnp.einsum("bij,bjf->bif", a, h.astype(a.dtype),
                     preferred_element_type=jnp.float32)      # (Bt, N, Fout_p)
    out = agg + h

    # Mask broadcast over the (padded) feature dim; lane-dense store.
    o_ref[...] = (out * mask_ref[...]).astype(o_ref.dtype)


def message_passing(x, A, mask, W, *, block_b=None,
                    compute_dtype=jnp.float32, out_dtype=jnp.float32):
    """Pallas implementation of MessagePassing.forward.

    x:    (B, N, Fin)
    A:    (B, N, N) or (B, N, N, E)  -- only edge type 0 is used
    mask: (B, N) or (B, N, 1)
    W:    (Fout, Fin)                -- PyTorch nn.Linear weight layout
    """
    if A.ndim == 3:
        A = A[..., None]
    # Edge-plane select.  Kept inside the same jit as the kernel so XLA fuses
    # it; a BlockSpec-side select would need a sub-minor block (N, 1) on the
    # edge dim, which the (8, 128) layout rule does not allow for E < 128.
    A = A[..., 0]
    if mask.ndim == 2:
        mask = mask[..., None]

    B, N, Fin = x.shape
    Fout = W.shape[0]

    compute_dtype = jnp.dtype(compute_dtype)
    out_dtype = jnp.dtype(out_dtype)

    # Pre-transpose W once (and pad its output dim to a multiple of 128) so the
    # kernel never transposes W and its output stores are lane-dense.
    Wt = jnp.asarray(W, compute_dtype).T                      # (Fin, Fout)
    Fout_p = -(-Fout // 128) * 128
    if Fout_p != Fout:
        Wt = jnp.pad(Wt, ((0, 0), (0, Fout_p - Fout)))

    x = jnp.asarray(x, compute_dtype)
    A = jnp.asarray(A, compute_dtype)
    mask = jnp.asarray(mask, jnp.float32)

    csz = compute_dtype.itemsize
    osz = out_dtype.itemsize

    def vmem_bytes(bt):
        # Double-buffered pipeline copies of every block (W included).
        return 2 * (bt * N * Fin * csz            # x block
                    + bt * N * N * csz            # A block
                    + bt * N * 128 * 4            # mask block (lane padded)
                    + Fin * Fout_p * csz          # W
                    + bt * N * Fout_p * osz)      # out block

    if block_b is None:
        # Fill the MXU M dimension (~256 rows) while staying well inside the
        # default scoped-VMEM budget of every generation (>= 16 MiB).
        target = max(1, 256 // max(N, 1))
        block_b = 1
        for d in range(min(B, target), 0, -1):
            if B % d == 0 and vmem_bytes(d) <= 8 * 2**20:
                block_b = d
                break
    Bt = block_b
    assert B % Bt == 0, "block_b must divide the batch size"
    # TODO(synk): for very large N (A block > VMEM budget even at Bt=1), add
    # row/column tiling of A with an f32 accumulator instead of whole-graph blocks.

    est = vmem_bytes(Bt)
    cp_kwargs = dict(dimension_semantics=("parallel",))
    if est > 12 * 2**20:
        cp_kwargs["vmem_limit_bytes"] = int(min(48 * 2**20, est + 4 * 2**20))

    flops = 2 * B * N * Fin * Fout_p + 2 * B * N * N * Fout_p + 2 * B * N * Fout_p
    bytes_accessed = (x.size * csz + A.size * csz + mask.size * 4
                      + Wt.size * csz + B * N * Fout_p * osz)
    cost = pl.CostEstimate(flops=flops, transcendentals=0,
                           bytes_accessed=bytes_accessed)

    out = pl.pallas_call(
        _message_passing_kernel,
        out_shape=jax.ShapeDtypeStruct((B, N, Fout_p), out_dtype),
        grid_spec=pltpu.PrefetchScalarGridSpec(
            num_scalar_prefetch=0,
            grid=(B // Bt,),
            in_specs=[
                pl.BlockSpec((Bt, N, Fin), lambda b: (b, 0, 0)),
                pl.BlockSpec((Bt, N, N), lambda b: (b, 0, 0)),
                pl.BlockSpec((Bt, N, 1), lambda b: (b, 0, 0)),
                pl.BlockSpec((Fin, Fout_p), lambda b: (0, 0)),
            ],
            out_specs=pl.BlockSpec((Bt, N, Fout_p), lambda b: (b, 0, 0)),
        ),
        compiler_params=pltpu.CompilerParams(**cp_kwargs),
        cost_estimate=cost,
    )(x, A, mask, Wt)

    if Fout_p != Fout:
        out = out[..., :Fout]
    return out


def _reference(x, A, mask, W):
    if A.ndim == 3:
        A = A[..., None]
    A0 = A[..., 0]
    if mask.ndim == 2:
        mask = mask[..., None]
    A_hat = A0 + jnp.eye(A0.shape[1], dtype=A0.dtype)[None]
    h = jnp.einsum("bnf,of->bno", x, W)
    out = jnp.einsum("bnm,bmo->bno", A_hat, h)
    return out * mask


if __name__ == "__main__":
    B, N, Fin, Fout = 8, 16, 32, 32

    key = jax.random.PRNGKey(0)
    kx, ka, km, kw = jax.random.split(key, 4)

    x = jax.random.normal(kx, (B, N, Fin), dtype=jnp.float32)
    # A as (B, N, N, E) like the module's 4-D branch; binary adjacency.
    A = (jax.random.uniform(ka, (B, N, N, 2)) > 0.5).astype(jnp.float32)
    mask = (jax.random.uniform(km, (B, N)) > 0.2).astype(jnp.float32)

    # Deterministic nn.Linear-style weight init (uniform +-1/sqrt(Fin)).
    bound = 1.0 / jnp.sqrt(jnp.float32(Fin))
    W = jax.random.uniform(kw, (Fout, Fin), minval=-bound, maxval=bound,
                           dtype=jnp.float32)

    ref = _reference(x, A, mask, W)

    # f32 operands (exact path).
    run_f32 = jax.jit(functools.partial(message_passing,
                                        compute_dtype=jnp.float32))
    out = jax.block_until_ready(run_f32(x, A, mask, W))
    assert out.shape == ref.shape
    assert jnp.allclose(out, ref, atol=1e-5, rtol=1e-5), "f32 mismatch vs reference"

    # bf16 matmul operands with f32 accumulation (v6e/v7x fast MXU path).
    run_bf16 = jax.jit(functools.partial(message_passing,
                                         compute_dtype=jnp.bfloat16))
    out_bf16 = jax.block_until_ready(run_bf16(x, A, mask, W))
    assert jnp.allclose(out_bf16, ref, atol=5e-2, rtol=5e-2), "bf16 mismatch vs reference"

    print("KERNEL_OK")
</pallas_src>

<mosaic_0001>
module attributes {stable_mosaic.version = 11 : i64} {
  func.func @_message_passing_kernel(%arg0: i32, %arg1: memref<8x16x32xf32, #tpu.memory_space<vmem>>, %arg2: memref<8x16x16xf32, #tpu.memory_space<vmem>>, %arg3: memref<8x16x1xf32, #tpu.memory_space<vmem>>, %arg4: memref<32x128xf32, #tpu.memory_space<vmem>>, %arg5: memref<8x16x128xf32, #tpu.memory_space<vmem>>) attributes {dimension_semantics = [#tpu.dimension_semantics<parallel>], iteration_bounds = array<i64: 1>, scalar_prefetch = 0 : i64, scratch_operands = 0 : i64, tpu.core_type = #tpu.core_type<tc>, window_params = [{transform_indices = @transform_0, window_bounds = array<i64: 8, 16, 32>}, {transform_indices = @transform_1, window_bounds = array<i64: 8, 16, 16>}, {transform_indices = @transform_2, window_bounds = array<i64: 8, 16, 1>}, {pipeline_mode = #tpu.pipeline_mode<synchronous>, transform_indices = @transform_3, window_bounds = array<i64: 32, 128>}, {transform_indices = @transform_4, window_bounds = array<i64: 8, 16, 128>}]} {
    %c0 = arith.constant 0 : index
    %c0_0 = arith.constant 0 : index
    %c0_1 = arith.constant 0 : index
    %0 = vector.load %arg1[%c0, %c0_0, %c0_1] : memref<8x16x32xf32, #tpu.memory_space<vmem>>, vector<8x16x32xf32>
    %c0_2 = arith.constant 0 : index
    %c0_3 = arith.constant 0 : index
    %c0_4 = arith.constant 0 : index
    %1 = vector.load %arg2[%c0_2, %c0_3, %c0_4] : memref<8x16x16xf32, #tpu.memory_space<vmem>>, vector<8x16x16xf32>
    %c0_5 = arith.constant 0 : index
    %c0_6 = arith.constant 0 : index
    %2 = vector.load %arg4[%c0_5, %c0_6] : memref<32x128xf32, #tpu.memory_space<vmem>>, vector<32x128xf32>
    %3 = vector.shape_cast %0 : vector<8x16x32xf32> to vector<128x32xf32>
    %cst = arith.constant dense<0.000000e+00> : vector<128x128xf32>
    %4 = tpu.matmul %3, %2, %cst {dimension_numbers = #tpu.dot_dimension_numbers<[1], [0], [0], [1], [0, 0, 1, 1], [], []>} : vector<128x32xf32>, vector<32x128xf32>, vector<128x128xf32> -> vector<128x128xf32>
    %5 = vector.shape_cast %4 : vector<128x128xf32> to vector<8x16x128xf32>
    "tpu.trace_start"() <{level = 10 : i32, message = "bij,bjf->bif"}> : () -> ()
    %cst_7 = arith.constant dense<0.000000e+00> : vector<8x16x128xf32>
    %6 = tpu.matmul %1, %5, %cst_7 {dimension_numbers = #tpu.dot_dimension_numbers<[2], [1], [1], [2], [0, 0, 0, 1, 1, 2], [0], [0]>} : vector<8x16x16xf32>, vector<8x16x128xf32>, vector<8x16x128xf32> -> vector<8x16x128xf32>
    "tpu.trace_stop"() : () -> ()
    %7 = arith.addf %6, %5 : vector<8x16x128xf32>
    %c0_8 = arith.constant 0 : index
    %c0_9 = arith.constant 0 : index
    %c0_10 = arith.constant 0 : index
    %8 = vector.load %arg3[%c0_8, %c0_9, %c0_10] : memref<8x16x1xf32, #tpu.memory_space<vmem>>, vector<8x16x1xf32>
    %9 = vector.broadcast %8 : vector<8x16x1xf32> to vector<8x16x128xf32>
    %10 = arith.mulf %7, %9 : vector<8x16x128xf32>
    %c0_11 = arith.constant 0 : index
    %c0_12 = arith.constant 0 : index
    %c0_13 = arith.constant 0 : index
    %11 = vector.load %arg5[%c0_11, %c0_12, %c0_13] : memref<8x16x128xf32, #tpu.memory_space<vmem>>, vector<8x16x128xf32>
    tpu.vector_store %arg5[%c0_11, %c0_12, %c0_13], %10 {strides = array<i32>} : memref<8x16x128xf32, #tpu.memory_space<vmem>>, vector<8x16x128xf32>,
    return
  }
  func.func @transform_0(%arg0: i32) -> (i32, i32, i32) {
    %c0_i32 = arith.constant 0 : i32
    %c0_i32_0 = arith.constant 0 : i32
    %c0_i32_1 = arith.constant 0 : i32
    return %arg0, %c0_i32, %c0_i32_0 : i32, i32, i32
  }
  func.func @transform_1(%arg0: i32) -> (i32, i32, i32) {
    %c0_i32 = arith.constant 0 : i32
    %c0_i32_0 = arith.constant 0 : i32
    %c0_i32_1 = arith.constant 0 : i32
    return %arg0, %c0_i32, %c0_i32_0 : i32, i32, i32
  }
  func.func @transform_2(%arg0: i32) -> (i32, i32, i32) {
    %c0_i32 = arith.constant 0 : i32
    %c0_i32_0 = arith.constant 0 : i32
    %c0_i32_1 = arith.constant 0 : i32
    return %arg0, %c0_i32, %c0_i32_0 : i32, i32, i32
  }
  func.func @transform_3(%arg0: i32) -> (i32, i32) {
    %c0_i32 = arith.constant 0 : i32
    %c0_i32_0 = arith.constant 0 : i32
    %c0_i32_1 = arith.constant 0 : i32
    return %c0_i32, %c0_i32_0 : i32, i32
  }
  func.func @transform_4(%arg0: i32) -> (i32, i32, i32) {
    %c0_i32 = arith.constant 0 : i32
    %c0_i32_0 = arith.constant 0 : i32
    %c0_i32_1 = arith.constant 0 : i32
    return %arg0, %c0_i32, %c0_i32_0 : i32, i32, i32
  }
}

</mosaic_0001>

<llo_original>
// kernel: message_passing.1
$region0: #{message_passing.1}
  #allocation0 [shape = 'u32[]', space=smem, size = 0x4, offset = 0x4, fixed_abs, tag = 'smem constant byte address 0x4 - core index']
  #allocation1 [shape = 'u32[144,128]{1,0:T(1,128)}', space=vmem, size = 0x12000, scoped, tag = 'internal scratch']
  %s0 = inlined_call_operand.vmem [shape: f32[8,16,32], index: 0, kind: input, shape index: {}]
  %s1 = inlined_call_operand.vmem [shape: f32[8,16,16], index: 1, kind: input, shape index: {}]
  %s2 = inlined_call_operand.vmem [shape: f32[8,16,1], index: 2, kind: input, shape index: {}]
  %s3 = inlined_call_operand.vmem [shape: f32[32,128], index: 3, kind: input, shape index: {}]
  %s4 = inlined_call_operand.hbm [shape: f32[8,16,128], index: 4, kind: output, shape index: {}]
  %s5 = sld [smem:[#allocation0]]
  $region26: #{message_passing.1} parent=0
    _
  %s7 = ssub.s32 1, %s5
  %s8 = scalar_select 0, %s7, %s5
  $region1: #{message_passing.1} parent=0
    #allocation2 [shape = 'u8[65536]{0}', space=vmem, size = 0x10000, scoped, tag = 'output window, operand 0, single buffered']
    #allocation3 [shape = 's32[1]{0}', space=sflag, size = 0x4, scoped, tag = 'scoped memory for message_passing.1']
    %9 = vsyncpa [#allocation3], 0
    // Predicated region
    $region2: #{message_passing.1} parent=1 // pred_check
      _
    $region3: #{message_passing.1} parent=1 // pred_check_branch
      %11 = sbr.rel (0) target = $region5
    $region4: #{message_passing.1} parent=1 // pred_region
      _
    $region5: #{message_passing.1} parent=1 // pred_fallthru
      _
    // Predicated region
    $region6: #{message_passing.1} parent=1 // pred_check
      _
    $region7: #{message_passing.1} parent=1 // pred_check_branch
      %13 = sbr.rel (0) target = $region9
    $region8: #{message_passing.1} parent=1 // pred_region
      _
    $region9: #{message_passing.1} parent=1 // pred_fallthru
      _
    // Predicated region
    $region10: #{message_passing.1} parent=1 // pred_check
      _
    $region11: #{message_passing.1} parent=1 // pred_check_branch
      %15 = sbr.rel (0) target = $region13
    $region12: #{message_passing.1} parent=1 // pred_region
      _
    $region13: #{message_passing.1} parent=1 // pred_fallthru
      _
    // Predicated region
    $region14: #{message_passing.1} parent=1 // pred_check
      _
    $region15: #{message_passing.1} parent=1 // pred_check_branch
      %17 = sbr.rel (0) target = $region17
    $region16: #{message_passing.1} parent=1 // pred_region
      _
    $region17: #{message_passing.1} parent=1 // pred_fallthru
      _
    %v18 = vld [vmem:[%s0] sm:$0xff]
    %v19 = vld [vmem:[%s0 + $0x8] sm:$0xff]
    %v20 = vld [vmem:[%s0 + $0x10] sm:$0xff]
    %v21 = vld [vmem:[%s0 + $0x18] sm:$0xff]
    %v22 = vld [vmem:[%s0 + $0x20] sm:$0xff]
    %v23 = vld [vmem:[%s0 + $0x28] sm:$0xff]
    %v24 = vld [vmem:[%s0 + $0x30] sm:$0xff]
    %v25 = vld [vmem:[%s0 + $0x38] sm:$0xff]
    %v26 = vld [vmem:[%s0 + $0x40] sm:$0xff]
    %v27 = vld [vmem:[%s0 + $0x48] sm:$0xff]
    %v28 = vld [vmem:[%s0 + $0x50] sm:$0xff]
    %v29 = vld [vmem:[%s0 + $0x58] sm:$0xff]
    %v30 = vld [vmem:[%s0 + $0x60] sm:$0xff]
    %v31 = vld [vmem:[%s0 + $0x68] sm:$0xff]
    %v32 = vld [vmem:[%s0 + $0x70] sm:$0xff]
    %v33 = vld [vmem:[%s0 + $0x78] sm:$0xff]
    %v34 = vld [vmem:[%s1] sm:$0xff]
    %v35 = vld [vmem:[%s1 + $0x8] sm:$0xff]
    %v36 = vld [vmem:[%s1 + $0x10] sm:$0xff]
    %v37 = vld [vmem:[%s1 + $0x18] sm:$0xff]
    %v38 = vld [vmem:[%s1 + $0x20] sm:$0xff]
    %v39 = vld [vmem:[%s1 + $0x28] sm:$0xff]
    %v40 = vld [vmem:[%s1 + $0x30] sm:$0xff]
    %v41 = vld [vmem:[%s1 + $0x38] sm:$0xff]
    %v42 = vld [vmem:[%s1 + $0x40] sm:$0xff]
    %v43 = vld [vmem:[%s1 + $0x48] sm:$0xff]
    %v44 = vld [vmem:[%s1 + $0x50] sm:$0xff]
    %v45 = vld [vmem:[%s1 + $0x58] sm:$0xff]
    %v46 = vld [vmem:[%s1 + $0x60] sm:$0xff]
    %v47 = vld [vmem:[%s1 + $0x68] sm:$0xff]
    %v48 = vld [vmem:[%s1 + $0x70] sm:$0xff]
    %v49 = vld [vmem:[%s1 + $0x78] sm:$0xff]
    %v50 = vld [vmem:[%s3] sm:$0xff]
    %v51 = vld [vmem:[%s3 + $0x8] sm:$0xff]
    %v52 = vld [vmem:[%s3 + $0x10] sm:$0xff]
    %v53 = vld [vmem:[%s3 + $0x18] sm:$0xff]
    %vm54 = vcmask 261120
    %v56 = vsel %vm54, %v18, 0
    %v59 = vsel %vm54, %v19, 0
    %v62 = vsel %vm54, %v20, 0
    %v65 = vsel %vm54, %v21, 0
    %v68 = vsel %vm54, %v22, 0
    %v71 = vsel %vm54, %v23, 0
    %v74 = vsel %vm54, %v24, 0
    %v77 = vsel %vm54, %v25, 0
    %v80 = vsel %vm54, %v26, 0
    %v83 = vsel %vm54, %v27, 0
    %v86 = vsel %vm54, %v28, 0
    %v89 = vsel %vm54, %v29, 0
    %v92 = vsel %vm54, %v30, 0
    %v95 = vsel %vm54, %v31, 0
    %v98 = vsel %vm54, %v32, 0
    %v101 = vsel %vm54, %v33, 0
    %103 = vmatprep.subr.mxu0 0.0
    %104 = vmatpush1.msra.mxu0 %v50
    %105 = vmatprep.subr.mxu0 0.0
    %106 = vmatpush1.msra.mxu0 %v51
    %107 = vmatprep.subr.mxu0 0.0
    %108 = vmatpush1.msra.mxu0 %v52
    %109 = vmatprep.subr.mxu0 0.0
    %110 = vmatpush1.msra.mxu0 %v53
    %111 = vmatprep.subr.mxu0 0.0
    %112 = vmatpush1.msra.mxu0 0.0
    %113 = vmatprep.subr.mxu0 0.0
    %114 = vmatpush1.msra.mxu0 0.0
    %115 = vmatprep.subr.mxu0 0.0
    %116 = vmatpush1.msra.mxu0 0.0
    %117 = vmatprep.subr.mxu0 0.0
    %118 = vmatpush1.msra.mxu0 0.0
    %119 = vmatprep.subr.mxu0 0.0
    %120 = vmatpush1.msra.mxu0 0.0
    %121 = vmatprep.subr.mxu0 0.0
    %122 = vmatpush1.msra.mxu0 0.0
    %123 = vmatprep.subr.mxu0 0.0
    %124 = vmatpush1.msra.mxu0 0.0
    %125 = vmatprep.subr.mxu0 0.0
    %126 = vmatpush1.msra.mxu0 0.0
    %127 = vmatprep.subr.mxu0 0.0
    %128 = vmatpush1.msra.mxu0 0.0
    %129 = vmatprep.subr.mxu0 0.0
    %130 = vmatpush1.msra.mxu0 0.0
    %131 = vmatprep.subr.mxu0 0.0
    %132 = vmatpush1.msra.mxu0 0.0
    %133 = vmatprep.subr.mxu0 0.0
    %134 = vmatpush1.msra.mxu0 0.0
    %135 = vmatprep.subr.mxu0 0.0
    %136 = vmatpush1.msra.mxu0 0.0
    %137 = vmatprep.subr.mxu0 0.0
    %138 = vmatpush1.msra.mxu0 0.0
    %139 = vmatprep.subr.mxu0 0.0
    %140 = vmatpush1.msra.mxu0 0.0
    %141 = vmatprep.subr.mxu0 0.0
    %142 = vmatpush1.msra.mxu0 0.0
    %143 = vmatprep.subr.mxu0 0.0
    %144 = vmatpush1.msra.mxu0 0.0
    %145 = vmatprep.subr.mxu0 0.0
    %146 = vmatpush1.msra.mxu0 0.0
    %147 = vmatprep.subr.mxu0 0.0
    %148 = vmatpush1.msra.mxu0 0.0
    %149 = vmatprep.subr.mxu0 0.0
    %150 = vmatpush1.msra.mxu0 0.0
    %151 = vmatprep.subr.mxu0 0.0
    %152 = vmatpush1.msra.mxu0 0.0
    %153 = vmatprep.subr.mxu0 0.0
    %154 = vmatpush1.msra.mxu0 0.0
    %155 = vmatprep.subr.mxu0 0.0
    %156 = vmatpush1.msra.mxu0 0.0
    %157 = vmatprep.subr.mxu0 0.0
    %158 = vmatpush1.msra.mxu0 0.0
    %159 = vmatprep.subr.mxu0 0.0
    %160 = vmatpush1.msra.mxu0 0.0
    %161 = vmatprep.subr.mxu0 0.0
    %162 = vmatpush1.msra.mxu0 0.0
    %163 = vmatprep.subr.mxu0 0.0
    %164 = vmatpush1.msra.mxu0 0.0
    %165 = vmatprep.subr.mxu0 0.0
    %166 = vmatpush1.msra.mxu0 0.0
    %167 = vmatprep.mubr.f32.mxu0 0.0
    %168 = vmatmul.mubr.f32.gmra.mrb[0].mxu0 %v56
    %v169 = vpop.f32.mrb[0].mxu0
    %v170 = vadd.f32 0.0, %v169
    %v171 = vpop.f32.mrb[0].mxu0
    %172 = vmatprep.mubr.f32.mxu0 0.0
    %173 = vmatmul.mubr.f32.gmra.mrb[0].mxu0 %v59
    %v174 = vpop.f32.mrb[0].mxu0
    %v175 = vadd.f32 0.0, %v174
    %v176 = vpop.f32.mrb[0].mxu0
    %177 = vmatprep.mubr.f32.mxu0 0.0
    %178 = vmatmul.mubr.f32.gmra.mrb[0].mxu0 %v62
    %v179 = vpop.f32.mrb[0].mxu0
    %v180 = vadd.f32 0.0, %v179
    %v181 = vpop.f32.mrb[0].mxu0
    %182 = vmatprep.mubr.f32.mxu0 0.0
    %183 = vmatmul.mubr.f32.gmra.mrb[0].mxu0 %v65
    %v184 = vpop.f32.mrb[0].mxu0
    %v185 = vadd.f32 0.0, %v184
    %v186 = vpop.f32.mrb[0].mxu0
    %187 = vmatprep.mubr.f32.mxu0 0.0
    %188 = vmatmul.mubr.f32.gmra.mrb[0].mxu0 %v68
    %v189 = vpop.f32.mrb[0].mxu0
    %v190 = vadd.f32 0.0, %v189
    %v191 = vpop.f32.mrb[0].mxu0
    %192 = vmatprep.mubr.f32.mxu0 0.0
    %193 = vmatmul.mubr.f32.gmra.mrb[0].mxu0 %v71
    %v194 = vpop.f32.mrb[0].mxu0
    %v195 = vadd.f32 0.0, %v194
    %v196 = vpop.f32.mrb[0].mxu0
    %197 = vmatprep.mubr.f32.mxu0 0.0
    %198 = vmatmul.mubr.f32.gmra.mrb[0].mxu0 %v74
    %v199 = vpop.f32.mrb[0].mxu0
    %v200 = vadd.f32 0.0, %v199
    %v201 = vpop.f32.mrb[0].mxu0
    %202 = vmatprep.mubr.f32.mxu0 0.0
    %203 = vmatmul.mubr.f32.gmra.mrb[0].mxu0 %v77
    %v204 = vpop.f32.mrb[0].mxu0
    %v205 = vadd.f32 0.0, %v204
    %v206 = vpop.f32.mrb[0].mxu0
    %207 = vmatprep.mubr.f32.mxu0 0.0
    %208 = vmatmul.mubr.f32.gmra.mrb[0].mxu0 %v80
    %v209 = vpop.f32.mrb[0].mxu0
    %v210 = vadd.f32 0.0, %v209
    %v211 = vpop.f32.mrb[0].mxu0
    %212 = vmatprep.mubr.f32.mxu0 0.0
    %213 = vmatmul.mubr.f32.gmra.mrb[0].mxu0 %v83
    %v214 = vpop.f32.mrb[0].mxu0
    %v215 = vadd.f32 0.0, %v214
    %v216 = vpop.f32.mrb[0].mxu0
    %217 = vmatprep.mubr.f32.mxu0 0.0
    %218 = vmatmul.mubr.f32.gmra.mrb[0].mxu0 %v86
    %v219 = vpop.f32.mrb[0].mxu0
    %v220 = vadd.f32 0.0, %v219
    %v221 = vpop.f32.mrb[0].mxu0
    %222 = vmatprep.mubr.f32.mxu0 0.0
    %223 = vmatmul.mubr.f32.gmra.mrb[0].mxu0 %v89
    %v224 = vpop.f32.mrb[0].mxu0
    %v225 = vadd.f32 0.0, %v224
    %v226 = vpop.f32.mrb[0].mxu0
    %227 = vmatprep.mubr.f32.mxu0 0.0
    %228 = vmatmul.mubr.f32.gmra.mrb[0].mxu0 %v92
    %v229 = vpop.f32.mrb[0].mxu0
    %v230 = vadd.f32 0.0, %v229
    %v231 = vpop.f32.mrb[0].mxu0
    %232 = vmatprep.mubr.f32.mxu0 0.0
    %233 = vmatmul.mubr.f32.gmra.mrb[0].mxu0 %v95
    %v234 = vpop.f32.mrb[0].mxu0
    %v235 = vadd.f32 0.0, %v234
    %v236 = vpop.f32.mrb[0].mxu0
    %237 = vmatprep.mubr.f32.mxu0 0.0
    %238 = vmatmul.mubr.f32.gmra.mrb[0].mxu0 %v98
    %v239 = vpop.f32.mrb[0].mxu0
    %v240 = vadd.f32 0.0, %v239
    %v241 = vpop.f32.mrb[0].mxu0
    %242 = vmatprep.mubr.f32.mxu0 0.0
    %243 = vmatmul.mubr.f32.gmra.mrb[0].mxu0 %v101
    %v244 = vpop.f32.mrb[0].mxu0
    %v245 = vadd.f32 0.0, %v244
    %v246 = vpop.f32.mrb[0].mxu0
    %247 = vdwg.mxu0
    %vm248 = vcmask 130048
    %v250 = vsel %vm248, %v34, 0
    %v253 = vsel %vm248, %v35, 0
    %255 = vmatprep.subr.mxu0 0.0
    %256 = vmatpush1.msra.mxu0 %v170
    %257 = vmatprep.subr.mxu0 0.0
    %258 = vmatpush1.msra.mxu0 %v175
    %259 = vmatprep.subr.mxu0 0.0
    %260 = vmatpush1.msra.mxu0 0.0
    %261 = vmatprep.subr.mxu0 0.0
    %262 = vmatpush1.msra.mxu0 0.0
    %263 = vmatprep.subr.mxu0 0.0
    %264 = vmatpush1.msra.mxu0 0.0
    %265 = vmatprep.subr.mxu0 0.0
    %266 = vmatpush1.msra.mxu0 0.0
    %267 = vmatprep.subr.mxu0 0.0
    %268 = vmatpush1.msra.mxu0 0.0
    %269 = vmatprep.subr.mxu0 0.0
    %270 = vmatpush1.msra.mxu0 0.0
    %271 = vmatprep.subr.mxu0 0.0
    %272 = vmatpush1.msra.mxu0 0.0
    %273 = vmatprep.subr.mxu0 0.0
    %274 = vmatpush1.msra.mxu0 0.0
    %275 = vmatprep.subr.mxu0 0.0
    %276 = vmatpush1.msra.mxu0 0.0
    %277 = vmatprep.subr.mxu0 0.0
    %278 = vmatpush1.msra.mxu0 0.0
    %279 = vmatprep.subr.mxu0 0.0
    %280 = vmatpush1.msra.mxu0 0.0
    %281 = vmatprep.subr.mxu0 0.0
    %282 = vmatpush1.msra.mxu0 0.0
    %283 = vmatprep.subr.mxu0 0.0
    %284 = vmatpush1.msra.mxu0 0.0
    %285 = vmatprep.subr.mxu0 0.0
    %286 = vmatpush1.msra.mxu0 0.0
    %287 = vmatprep.subr.mxu0 0.0
    %288 = vmatpush1.msra.mxu0 0.0
    %289 = vmatprep.subr.mxu0 0.0
    %290 = vmatpush1.msra.mxu0 0.0
    %291 = vmatprep.subr.mxu0 0.0
    %292 = vmatpush1.msra.mxu0 0.0
    %293 = vmatprep.subr.mxu0 0.0
    %294 = vmatpush1.msra.mxu0 0.0
    %295 = vmatprep.subr.mxu0 0.0
    %296 = vmatpush1.msra.mxu0 0.0
    %297 = vmatprep.subr.mxu0 0.0
    %298 = vmatpush1.msra.mxu0 0.0
    %299 = vmatprep.subr.mxu0 0.0
    %300 = vmatpush1.msra.mxu0 0.0
    %301 = vmatprep.subr.mxu0 0.0
    %302 = vmatpush1.msra.mxu0 0.0
    %303 = vmatprep.subr.mxu0 0.0
    %304 = vmatpush1.msra.mxu0 0.0
    %305 = vmatprep.subr.mxu0 0.0
    %306 = vmatpush1.msra.mxu0 0.0
    %307 = vmatprep.subr.mxu0 0.0
    %308 = vmatpush1.msra.mxu0 0.0
    %309 = vmatprep.subr.mxu0 0.0
    %310 = vmatpush1.msra.mxu0 0.0
    %311 = vmatprep.subr.mxu0 0.0
    %312 = vmatpush1.msra.mxu0 0.0
    %313 = vmatprep.subr.mxu0 0.0
    %314 = vmatpush1.msra.mxu0 0.0
    %315 = vmatprep.subr.mxu0 0.0
    %316 = vmatpush1.msra.mxu0 0.0
    %317 = vmatprep.subr.mxu0 0.0
    %318 = vmatpush1.msra.mxu0 0.0
    %319 = vmatprep.mubr.f32.mxu0 0.0
    %320 = vmatmul.mubr.f32.gmra.mrb[0].mxu0 %v250
    %v321 = vpop.f32.mrb[0].mxu0
    %v322 = vadd.f32 %v170, %v321
    %v323 = vpop.f32.mrb[0].mxu0
    %324 = vmatprep.mubr.f32.mxu0 0.0
    %325 = vmatmul.mubr.f32.gmra.mrb[0].mxu0 %v253
    %v326 = vpop.f32.mrb[0].mxu0
    %v327 = vadd.f32 %v175, %v326
    %v328 = vpop.f32.mrb[0].mxu0
    %329 = vdwg.mxu0
    %v331 = vsel %vm248, %v36, 0
    %v334 = vsel %vm248, %v37, 0
    %336 = vmatprep.subr.mxu0 0.0
    %337 = vmatpush1.msra.mxu0 %v180
    %338 = vmatprep.subr.mxu0 0.0
    %339 = vmatpush1.msra.mxu0 %v185
    %340 = vmatprep.subr.mxu0 0.0
    %341 = vmatpush1.msra.mxu0 0.0
    %342 = vmatprep.subr.mxu0 0.0
    %343 = vmatpush1.msra.mxu0 0.0
    %344 = vmatprep.subr.mxu0 0.0
    %345 = vmatpush1.msra.mxu0 0.0
    %346 = vmatprep.subr.mxu0 0.0
    %347 = vmatpush1.msra.mxu0 0.0
    %348 = vmatprep.subr.mxu0 0.0
    %349 = vmatpush1.msra.mxu0 0.0
    %350 = vmatprep.subr.mxu0 0.0
    %351 = vmatpush1.msra.mxu0 0.0
    %352 = vmatprep.subr.mxu0 0.0
    %353 = vmatpush1.msra.mxu0 0.0
    %354 = vmatprep.subr.mxu0 0.0
    %355 = vmatpush1.msra.mxu0 0.0
    %356 = vmatprep.subr.mxu0 0.0
    %357 = vmatpush1.msra.mxu0 0.0
    %358 = vmatprep.subr.mxu0 0.0
    %359 = vmatpush1.msra.mxu0 0.0
    %360 = vmatprep.subr.mxu0 0.0
    %361 = vmatpush1.msra.mxu0 0.0
    %362 = vmatprep.subr.mxu0 0.0
    %363 = vmatpush1.msra.mxu0 0.0
    %364 = vmatprep.subr.mxu0 0.0
    %365 = vmatpush1.msra.mxu0 0.0
    %366 = vmatprep.subr.mxu0 0.0
    %367 = vmatpush1.msra.mxu0 0.0
    %368 = vmatprep.subr.mxu0 0.0
    %369 = vmatpush1.msra.mxu0 0.0
    %370 = vmatprep.subr.mxu0 0.0
    %371 = vmatpush1.msra.mxu0 0.0
    %372 = vmatprep.subr.mxu0 0.0
    %373 = vmatpush1.msra.mxu0 0.0
    %374 = vmatprep.subr.mxu0 0.0
    %375 = vmatpush1.msra.mxu0 0.0
    %376 = vmatprep.subr.mxu0 0.0
    %377 = vmatpush1.msra.mxu0 0.0
    %378 = vmatprep.subr.mxu0 0.0
    %379 = vmatpush1.msra.mxu0 0.0
    %380 = vmatprep.subr.mxu0 0.0
    %381 = vmatpush1.msra.mxu0 0.0
    %382 = vmatprep.subr.mxu0 0.0
    %383 = vmatpush1.msra.mxu0 0.0
    %384 = vmatprep.subr.mxu0 0.0
    %385 = vmatpush1.msra.mxu0 0.0
    %386 = vmatprep.subr.mxu0 0.0
    %387 = vmatpush1.msra.mxu0 0.0
    %388 = vmatprep.subr.mxu0 0.0
    %389 = vmatpush1.msra.mxu0 0.0
    %390 = vmatprep.subr.mxu0 0.0
    %391 = vmatpush1.msra.mxu0 0.0
    %392 = vmatprep.subr.mxu0 0.0
    %393 = vmatpush1.msra.mxu0 0.0
    %394 = vmatprep.subr.mxu0 0.0
    %395 = vmatpush1.msra.mxu0 0.0
    %396 = vmatprep.subr.mxu0 0.0
    %397 = vmatpush1.msra.mxu0 0.0
    %398 = vmatprep.subr.mxu0 0.0
    %399 = vmatpush1.msra.mxu0 0.0
    %400 = vmatprep.mubr.f32.mxu0 0.0
    %401 = vmatmul.mubr.f32.gmra.mrb[0].mxu0 %v331
    %v402 = vpop.f32.mrb[0].mxu0
    %v403 = vadd.f32 %v180, %v402
    %v404 = vpop.f32.mrb[0].mxu0
    %405 = vmatprep.mubr.f32.mxu0 0.0
    %406 = vmatmul.mubr.f32.gmra.mrb[0].mxu0 %v334
    %v407 = vpop.f32.mrb[0].mxu0
    %v408 = vadd.f32 %v185, %v407
    %v409 = vpop.f32.mrb[0].mxu0
    %410 = vdwg.mxu0
    %v412 = vsel %vm248, %v38, 0
    %v415 = vsel %vm248, %v39, 0
    %417 = vmatprep.subr.mxu0 0.0
    %418 = vmatpush1.msra.mxu0 %v190
    %419 = vmatprep.subr.mxu0 0.0
    %420 = vmatpush1.msra.mxu0 %v195
    %421 = vmatprep.subr.mxu0 0.0
    %422 = vmatpush1.msra.mxu0 0.0
    %423 = vmatprep.subr.mxu0 0.0
    %424 = vmatpush1.msra.mxu0 0.0
    %425 = vmatprep.subr.mxu0 0.0
    %426 = vmatpush1.msra.mxu0 0.0
    %427 = vmatprep.subr.mxu0 0.0
    %428 = vmatpush1.msra.mxu0 0.0
    %429 = vmatprep.subr.mxu0 0.0
    %430 = vmatpush1.msra.mxu0 0.0
    %431 = vmatprep.subr.mxu0 0.0
    %432 = vmatpush1.msra.mxu0 0.0
    %433 = vmatprep.subr.mxu0 0.0
    %434 = vmatpush1.msra.mxu0 0.0
    %435 = vmatprep.subr.mxu0 0.0
    %436 = vmatpush1.msra.mxu0 0.0
    %437 = vmatprep.subr.mxu0 0.0
    %438 = vmatpush1.msra.mxu0 0.0
    %439 = vmatprep.subr.mxu0 0.0
    %440 = vmatpush1.msra.mxu0 0.0
    %441 = vmatprep.subr.mxu0 0.0
    %442 = vmatpush1.msra.mxu0 0.0
    %443 = vmatprep.subr.mxu0 0.0
    %444 = vmatpush1.msra.mxu0 0.0
    %445 = vmatprep.subr.mxu0 0.0
    %446 = vmatpush1.msra.mxu0 0.0
    %447 = vmatprep.subr.mxu0 0.0
    %448 = vmatpush1.msra.mxu0 0.0
    %449 = vmatprep.subr.mxu0 0.0
    %450 = vmatpush1.msra.mxu0 0.0
    %451 = vmatprep.subr.mxu0 0.0
    %452 = vmatpush1.msra.mxu0 0.0
    %453 = vmatprep.subr.mxu0 0.0
    %454 = vmatpush1.msra.mxu0 0.0
    %455 = vmatprep.subr.mxu0 0.0
    %456 = vmatpush1.msra.mxu0 0.0
    %457 = vmatprep.subr.mxu0 0.0
    %458 = vmatpush1.msra.mxu0 0.0
    %459 = vmatprep.subr.mxu0 0.0
    %460 = vmatpush1.msra.mxu0 0.0
    %461 = vmatprep.subr.mxu0 0.0
    %462 = vmatpush1.msra.mxu0 0.0
    %463 = vmatprep.subr.mxu0 0.0
    %464 = vmatpush1.msra.mxu0 0.0
    %465 = vmatprep.subr.mxu0 0.0
    %466 = vmatpush1.msra.mxu0 0.0
    %467 = vmatprep.subr.mxu0 0.0
    %468 = vmatpush1.msra.mxu0 0.0
    %469 = vmatprep.subr.mxu0 0.0
    %470 = vmatpush1.msra.mxu0 0.0
    %471 = vmatprep.subr.mxu0 0.0
    %472 = vmatpush1.msra.mxu0 0.0
    %473 = vmatprep.subr.mxu0 0.0
    %474 = vmatpush1.msra.mxu0 0.0
    %475 = vmatprep.subr.mxu0 0.0
    %476 = vmatpush1.msra.mxu0 0.0
    %477 = vmatprep.subr.mxu0 0.0
    %478 = vmatpush1.msra.mxu0 0.0
    %479 = vmatprep.subr.mxu0 0.0
    %480 = vmatpush1.msra.mxu0 0.0
    %481 = vmatprep.mubr.f32.mxu0 0.0
    %482 = vmatmul.mubr.f32.gmra.mrb[0].mxu0 %v412
    %v483 = vpop.f32.mrb[0].mxu0
    %v484 = vadd.f32 %v190, %v483
    %v485 = vpop.f32.mrb[0].mxu0
    %486 = vmatprep.mubr.f32.mxu0 0.0
    %487 = vmatmul.mubr.f32.gmra.mrb[0].mxu0 %v415
    %v488 = vpop.f32.mrb[0].mxu0
    %v489 = vadd.f32 %v195, %v488
    %v490 = vpop.f32.mrb[0].mxu0
    %491 = vdwg.mxu0
    %v493 = vsel %vm248, %v40, 0
    %v496 = vsel %vm248, %v41, 0
    %498 = vmatprep.subr.mxu0 0.0
    %499 = vmatpush1.msra.mxu0 %v200
    %500 = vmatprep.subr.mxu0 0.0
    %501 = vmatpush1.msra.mxu0 %v205
    %502 = vmatprep.subr.mxu0 0.0
    %503 = vmatpush1.msra.mxu0 0.0
    %504 = vmatprep.subr.mxu0 0.0
    %505 = vmatpush1.msra.mxu0 0.0
    %506 = vmatprep.subr.mxu0 0.0
    %507 = vmatpush1.msra.mxu0 0.0
    %508 = vmatprep.subr.mxu0 0.0
    %509 = vmatpush1.msra.mxu0 0.0
    %510 = vmatprep.subr.mxu0 0.0
    %511 = vmatpush1.msra.mxu0 0.0
    %512 = vmatprep.subr.mxu0 0.0
    %513 = vmatpush1.msra.mxu0 0.0
    %514 = vmatprep.subr.mxu0 0.0
    %515 = vmatpush1.msra.mxu0 0.0
    %516 = vmatprep.subr.mxu0 0.0
    %517 = vmatpush1.msra.mxu0 0.0
    %518 = vmatprep.subr.mxu0 0.0
    %519 = vmatpush1.msra.mxu0 0.0
    %520 = vmatprep.subr.mxu0 0.0
    %521 = vmatpush1.msra.mxu0 0.0
    %522 = vmatprep.subr.mxu0 0.0
    %523 = vmatpush1.msra.mxu0 0.0
    %524 = vmatprep.subr.mxu0 0.0
    %525 = vmatpush1.msra.mxu0 0.0
    %526 = vmatprep.subr.mxu0 0.0
    %527 = vmatpush1.msra.mxu0 0.0
    %528 = vmatprep.subr.mxu0 0.0
    %529 = vmatpush1.msra.mxu0 0.0
    %530 = vmatprep.subr.mxu0 0.0
    %531 = vmatpush1.msra.mxu0 0.0
    %532 = vmatprep.subr.mxu0 0.0
    %533 = vmatpush1.msra.mxu0 0.0
    %534 = vmatprep.subr.mxu0 0.0
    %535 = vmatpush1.msra.mxu0 0.0
    %536 = vmatprep.subr.mxu0 0.0
    %537 = vmatpush1.msra.mxu0 0.0
    %538 = vmatprep.subr.mxu0 0.0
    %539 = vmatpush1.msra.mxu0 0.0
    %540 = vmatprep.subr.mxu0 0.0
    %541 = vmatpush1.msra.mxu0 0.0
    %542 = vmatprep.subr.mxu0 0.0
    %543 = vmatpush1.msra.mxu0 0.0
    %544 = vmatprep.subr.mxu0 0.0
    %545 = vmatpush1.msra.mxu0 0.0
    %546 = vmatprep.subr.mxu0 0.0
    %547 = vmatpush1.msra.mxu0 0.0
    %548 = vmatprep.subr.mxu0 0.0
    %549 = vmatpush1.msra.mxu0 0.0
    %550 = vmatprep.subr.mxu0 0.0
    %551 = vmatpush1.msra.mxu0 0.0
    %552 = vmatprep.subr.mxu0 0.0
    %553 = vmatpush1.msra.mxu0 0.0
    %554 = vmatprep.subr.mxu0 0.0
    %555 = vmatpush1.msra.mxu0 0.0
    %556 = vmatprep.subr.mxu0 0.0
    %557 = vmatpush1.msra.mxu0 0.0
    %558 = vmatprep.subr.mxu0 0.0
    %559 = vmatpush1.msra.mxu0 0.0
    %560 = vmatprep.subr.mxu0 0.0
    %561 = vmatpush1.msra.mxu0 0.0
    %562 = vmatprep.mubr.f32.mxu0 0.0
    %563 = vmatmul.mubr.f32.gmra.mrb[0].mxu0 %v493
    %v564 = vpop.f32.mrb[0].mxu0
    %v565 = vadd.f32 %v200, %v564
    %v566 = vpop.f32.mrb[0].mxu0
    %567 = vmatprep.mubr.f32.mxu0 0.0
    %568 = vmatmul.mubr.f32.gmra.mrb[0].mxu0 %v496
    %v569 = vpop.f32.mrb[0].mxu0
    %v570 = vadd.f32 %v205, %v569
    %v571 = vpop.f32.mrb[0].mxu0
    %572 = vdwg.mxu0
    %v574 = vsel %vm248, %v42, 0
    %v577 = vsel %vm248, %v43, 0
    %579 = vmatprep.subr.mxu0 0.0
    %580 = vmatpush1.msra.mxu0 %v210
    %581 = vmatprep.subr.mxu0 0.0
    %582 = vmatpush1.msra.mxu0 %v215
    %583 = vmatprep.subr.mxu0 0.0
    %584 = vmatpush1.msra.mxu0 0.0
    %585 = vmatprep.subr.mxu0 0.0
    %586 = vmatpush1.msra.mxu0 0.0
    %587 = vmatprep.subr.mxu0 0.0
    %588 = vmatpush1.msra.mxu0 0.0
    %589 = vmatprep.subr.mxu0 0.0
    %590 = vmatpush1.msra.mxu0 0.0
    %591 = vmatprep.subr.mxu0 0.0
    %592 = vmatpush1.msra.mxu0 0.0
    %593 = vmatprep.subr.mxu0 0.0
    %594 = vmatpush1.msra.mxu0 0.0
    %595 = vmatprep.subr.mxu0 0.0
    %596 = vmatpush1.msra.mxu0 0.0
    %597 = vmatprep.subr.mxu0 0.0
    %598 = vmatpush1.msra.mxu0 0.0
    %599 = vmatprep.subr.mxu0 0.0
    %600 = vmatpush1.msra.mxu0 0.0
    %601 = vmatprep.subr.mxu0 0.0
    %602 = vmatpush1.msra.mxu0 0.0
    %603 = vmatprep.subr.mxu0 0.0
    %604 = vmatpush1.msra.mxu0 0.0
    %605 = vmatprep.subr.mxu0 0.0
    %606 = vmatpush1.msra.mxu0 0.0
    %607 = vmatprep.subr.mxu0 0.0
    %608 = vmatpush1.msra.mxu0 0.0
    %609 = vmatprep.subr.mxu0 0.0
    %610 = vmatpush1.msra.mxu0 0.0
    %611 = vmatprep.subr.mxu0 0.0
    %612 = vmatpush1.msra.mxu0 0.0
    %613 = vmatprep.subr.mxu0 0.0
    %614 = vmatpush1.msra.mxu0 0.0
    %615 = vmatprep.subr.mxu0 0.0
    %616 = vmatpush1.msra.mxu0 0.0
    %617 = vmatprep.subr.mxu0 0.0
    %618 = vmatpush1.msra.mxu0 0.0
    %619 = vmatprep.subr.mxu0 0.0
    %620 = vmatpush1.msra.mxu0 0.0
    %621 = vmatprep.subr.mxu0 0.0
    %622 = vmatpush1.msra.mxu0 0.0
    %623 = vmatprep.subr.mxu0 0.0
    %624 = vmatpush1.msra.mxu0 0.0
    %625 = vmatprep.subr.mxu0 0.0
    %626 = vmatpush1.msra.mxu0 0.0
    %627 = vmatprep.subr.mxu0 0.0
    %628 = vmatpush1.msra.mxu0 0.0
    %629 = vmatprep.subr.mxu0 0.0
    %630 = vmatpush1.msra.mxu0 0.0
    %631 = vmatprep.subr.mxu0 0.0
    %632 = vmatpush1.msra.mxu0 0.0
    %633 = vmatprep.subr.mxu0 0.0
    %634 = vmatpush1.msra.mxu0 0.0
    %635 = vmatprep.subr.mxu0 0.0
    %636 = vmatpush1.msra.mxu0 0.0
    %637 = vmatprep.subr.mxu0 0.0
    %638 = vmatpush1.msra.mxu0 0.0
    %639 = vmatprep.subr.mxu0 0.0
    %640 = vmatpush1.msra.mxu0 0.0
    %641 = vmatprep.subr.mxu0 0.0
    %642 = vmatpush1.msra.mxu0 0.0
    %643 = vmatprep.mubr.f32.mxu0 0.0
    %644 = vmatmul.mubr.f32.gmra.mrb[0].mxu0 %v574
    %v645 = vpop.f32.mrb[0].mxu0
    %v646 = vadd.f32 %v210, %v645
    %v647 = vpop.f32.mrb[0].mxu0
    %648 = vmatprep.mubr.f32.mxu0 0.0
    %649 = vmatmul.mubr.f32.gmra.mrb[0].mxu0 %v577
    %v650 = vpop.f32.mrb[0].mxu0
    %v651 = vadd.f32 %v215, %v650
    %v652 = vpop.f32.mrb[0].mxu0
    %653 = vdwg.mxu0
    %v655 = vsel %vm248, %v44, 0
    %v658 = vsel %vm248, %v45, 0
    %660 = vmatprep.subr.mxu0 0.0
    %661 = vmatpush1.msra.mxu0 %v220
    %662 = vmatprep.subr.mxu0 0.0
    %663 = vmatpush1.msra.mxu0 %v225
    %664 = vmatprep.subr.mxu0 0.0
    %665 = vmatpush1.msra.mxu0 0.0
    %666 = vmatprep.subr.mxu0 0.0
    %667 = vmatpush1.msra.mxu0 0.0
    %668 = vmatprep.subr.mxu0 0.0
    %669 = vmatpush1.msra.mxu0 0.0
    %670 = vmatprep.subr.mxu0 0.0
    %671 = vmatpush1.msra.mxu0 0.0
    %672 = vmatprep.subr.mxu0 0.0
    %673 = vmatpush1.msra.mxu0 0.0
    %674 = vmatprep.subr.mxu0 0.0
    %675 = vmatpush1.msra.mxu0 0.0
    %676 = vmatprep.subr.mxu0 0.0
    %677 = vmatpush1.msra.mxu0 0.0
    %678 = vmatprep.subr.mxu0 0.0
    %679 = vmatpush1.msra.mxu0 0.0
    %680 = vmatprep.subr.mxu0 0.0
    %681 = vmatpush1.msra.mxu0 0.0
    %682 = vmatprep.subr.mxu0 0.0
    %683 = vmatpush1.msra.mxu0 0.0
    %684 = vmatprep.subr.mxu0 0.0
    %685 = vmatpush1.msra.mxu0 0.0
    %686 = vmatprep.subr.mxu0 0.0
    %687 = vmatpush1.msra.mxu0 0.0
    %688 = vmatprep.subr.mxu0 0.0
    %689 = vmatpush1.msra.mxu0 0.0
    %690 = vmatprep.subr.mxu0 0.0
    %691 = vmatpush1.msra.mxu0 0.0
    %692 = vmatprep.subr.mxu0 0.0
    %693 = vmatpush1.msra.mxu0 0.0
    %694 = vmatprep.subr.mxu0 0.0
    %695 = vmatpush1.msra.mxu0 0.0
    %696 = vmatprep.subr.mxu0 0.0
    %697 = vmatpush1.msra.mxu0 0.0
    %698 = vmatprep.subr.mxu0 0.0
    %699 = vmatpush1.msra.mxu0 0.0
    %700 = vmatprep.subr.mxu0 0.0
    %701 = vmatpush1.msra.mxu0 0.0
    %702 = vmatprep.subr.mxu0 0.0
    %703 = vmatpush1.msra.mxu0 0.0
    %704 = vmatprep.subr.mxu0 0.0
    %705 = vmatpush1.msra.mxu0 0.0
    %706 = vmatprep.subr.mxu0 0.0
    %707 = vmatpush1.msra.mxu0 0.0
    %708 = vmatprep.subr.mxu0 0.0
    %709 = vmatpush1.msra.mxu0 0.0
    %710 = vmatprep.subr.mxu0 0.0
    %711 = vmatpush1.msra.mxu0 0.0
    %712 = vmatprep.subr.mxu0 0.0
    %713 = vmatpush1.msra.mxu0 0.0
    %714 = vmatprep.subr.mxu0 0.0
    %715 = vmatpush1.msra.mxu0 0.0
    %716 = vmatprep.subr.mxu0 0.0
    %717 = vmatpush1.msra.mxu0 0.0
    %718 = vmatprep.subr.mxu0 0.0
    %719 = vmatpush1.msra.mxu0 0.0
    %720 = vmatprep.subr.mxu0 0.0
    %721 = vmatpush1.msra.mxu0 0.0
    %722 = vmatprep.subr.mxu0 0.0
    %723 = vmatpush1.msra.mxu0 0.0
    %724 = vmatprep.mubr.f32.mxu0 0.0
    %725 = vmatmul.mubr.f32.gmra.mrb[0].mxu0 %v655
    %v726 = vpop.f32.mrb[0].mxu0
    %v727 = vadd.f32 %v220, %v726
    %v728 = vpop.f32.mrb[0].mxu0
    %729 = vmatprep.mubr.f32.mxu0 0.0
    %730 = vmatmul.mubr.f32.gmra.mrb[0].mxu0 %v658
    %v731 = vpop.f32.mrb[0].mxu0
    %v732 = vadd.f32 %v225, %v731
    %v733 = vpop.f32.mrb[0].mxu0
    %734 = vdwg.mxu0
    %v736 = vsel %vm248, %v46, 0
    %v739 = vsel %vm248, %v47, 0
    %741 = vmatprep.subr.mxu0 0.0
    %742 = vmatpush1.msra.mxu0 %v230
    %743 = vmatprep.subr.mxu0 0.0
    %744 = vmatpush1.msra.mxu0 %v235
    %745 = vmatprep.subr.mxu0 0.0
    %746 = vmatpush1.msra.mxu0 0.0
    %747 = vmatprep.subr.mxu0 0.0
    %748 = vmatpush1.msra.mxu0 0.0
    %749 = vmatprep.subr.mxu0 0.0
    %750 = vmatpush1.msra.mxu0 0.0
    %751 = vmatprep.subr.mxu0 0.0
    %752 = vmatpush1.msra.mxu0 0.0
    %753 = vmatprep.subr.mxu0 0.0
    %754 = vmatpush1.msra.mxu0 0.0
    %755 = vmatprep.subr.mxu0 0.0
    %756 = vmatpush1.msra.mxu0 0.0
    %757 = vmatprep.subr.mxu0 0.0
    %758 = vmatpush1.msra.mxu0 0.0
    %759 = vmatprep.subr.mxu0 0.0
    %760 = vmatpush1.msra.mxu0 0.0
    %761 = vmatprep.subr.mxu0 0.0
    %762 = vmatpush1.msra.mxu0 0.0
    %763 = vmatprep.subr.mxu0 0.0
    %764 = vmatpush1.msra.mxu0 0.0
    %765 = vmatprep.subr.mxu0 0.0
    %766 = vmatpush1.msra.mxu0 0.0
    %767 = vmatprep.subr.mxu0 0.0
    %768 = vmatpush1.msra.mxu0 0.0
    %769 = vmatprep.subr.mxu0 0.0
    %770 = vmatpush1.msra.mxu0 0.0
    %771 = vmatprep.subr.mxu0 0.0
    %772 = vmatpush1.msra.mxu0 0.0
    %773 = vmatprep.subr.mxu0 0.0
    %774 = vmatpush1.msra.mxu0 0.0
    %775 = vmatprep.subr.mxu0 0.0
    %776 = vmatpush1.msra.mxu0 0.0
    %777 = vmatprep.subr.mxu0 0.0
    %778 = vmatpush1.msra.mxu0 0.0
    %779 = vmatprep.subr.mxu0 0.0
    %780 = vmatpush1.msra.mxu0 0.0
    %781 = vmatprep.subr.mxu0 0.0
    %782 = vmatpush1.msra.mxu0 0.0
    %783 = vmatprep.subr.mxu0 0.0
    %784 = vmatpush1.msra.mxu0 0.0
    %785 = vmatprep.subr.mxu0 0.0
    %786 = vmatpush1.msra.mxu0 0.0
    %787 = vmatprep.subr.mxu0 0.0
    %788 = vmatpush1.msra.mxu0 0.0
    %789 = vmatprep.subr.mxu0 0.0
    %790 = vmatpush1.msra.mxu0 0.0
    %791 = vmatprep.subr.mxu0 0.0
    %792 = vmatpush1.msra.mxu0 0.0
    %793 = vmatprep.subr.mxu0 0.0
    %794 = vmatpush1.msra.mxu0 0.0
    %795 = vmatprep.subr.mxu0 0.0
    %796 = vmatpush1.msra.mxu0 0.0
    %797 = vmatprep.subr.mxu0 0.0
    %798 = vmatpush1.msra.mxu0 0.0
    %799 = vmatprep.subr.mxu0 0.0
    %800 = vmatpush1.msra.mxu0 0.0
    %801 = vmatprep.subr.mxu0 0.0
    %802 = vmatpush1.msra.mxu0 0.0
    %803 = vmatprep.subr.mxu0 0.0
    %804 = vmatpush1.msra.mxu0 0.0
    %805 = vmatprep.mubr.f32.mxu0 0.0
    %806 = vmatmul.mubr.f32.gmra.mrb[0].mxu0 %v736
    %v807 = vpop.f32.mrb[0].mxu0
    %v808 = vadd.f32 %v230, %v807
    %v809 = vpop.f32.mrb[0].mxu0
    %810 = vmatprep.mubr.f32.mxu0 0.0
    %811 = vmatmul.mubr.f32.gmra.mrb[0].mxu0 %v739
    %v812 = vpop.f32.mrb[0].mxu0
    %v813 = vadd.f32 %v235, %v812
    %v814 = vpop.f32.mrb[0].mxu0
    %815 = vdwg.mxu0
    %v817 = vsel %vm248, %v48, 0
    %v820 = vsel %vm248, %v49, 0
    %822 = vmatprep.subr.mxu0 0.0
    %823 = vmatpush1.msra.mxu0 %v240
    %824 = vmatprep.subr.mxu0 0.0
    %825 = vmatpush1.msra.mxu0 %v245
    %826 = vmatprep.subr.mxu0 0.0
    %827 = vmatpush1.msra.mxu0 0.0
    %828 = vmatprep.subr.mxu0 0.0
    %829 = vmatpush1.msra.mxu0 0.0
    %830 = vmatprep.subr.mxu0 0.0
    %831 = vmatpush1.msra.mxu0 0.0
    %832 = vmatprep.subr.mxu0 0.0
    %833 = vmatpush1.msra.mxu0 0.0
    %834 = vmatprep.subr.mxu0 0.0
    %835 = vmatpush1.msra.mxu0 0.0
    %836 = vmatprep.subr.mxu0 0.0
    %837 = vmatpush1.msra.mxu0 0.0
    %838 = vmatprep.subr.mxu0 0.0
    %839 = vmatpush1.msra.mxu0 0.0
    %840 = vmatprep.subr.mxu0 0.0
    %841 = vmatpush1.msra.mxu0 0.0
    %842 = vmatprep.subr.mxu0 0.0
    %843 = vmatpush1.msra.mxu0 0.0
    %844 = vmatprep.subr.mxu0 0.0
    %845 = vmatpush1.msra.mxu0 0.0
    %846 = vmatprep.subr.mxu0 0.0
    %847 = vmatpush1.msra.mxu0 0.0
    %848 = vmatprep.subr.mxu0 0.0
    %849 = vmatpush1.msra.mxu0 0.0
    %850 = vmatprep.subr.mxu0 0.0
    %851 = vmatpush1.msra.mxu0 0.0
    %852 = vmatprep.subr.mxu0 0.0
    %853 = vmatpush1.msra.mxu0 0.0
    %854 = vmatprep.subr.mxu0 0.0
    %855 = vmatpush1.msra.mxu0 0.0
    %856 = vmatprep.subr.mxu0 0.0
    %857 = vmatpush1.msra.mxu0 0.0
    %858 = vmatprep.subr.mxu0 0.0
    %859 = vmatpush1.msra.mxu0 0.0
    %860 = vmatprep.subr.mxu0 0.0
    %861 = vmatpush1.msra.mxu0 0.0
    %862 = vmatprep.subr.mxu0 0.0
    %863 = vmatpush1.msra.mxu0 0.0
    %864 = vmatprep.subr.mxu0 0.0
    %865 = vmatpush1.msra.mxu0 0.0
    %866 = vmatprep.subr.mxu0 0.0
    %867 = vmatpush1.msra.mxu0 0.0
    %868 = vmatprep.subr.mxu0 0.0
    %869 = vmatpush1.msra.mxu0 0.0
    %870 = vmatprep.subr.mxu0 0.0
    %871 = vmatpush1.msra.mxu0 0.0
    %872 = vmatprep.subr.mxu0 0.0
    %873 = vmatpush1.msra.mxu0 0.0
    %874 = vmatprep.subr.mxu0 0.0
    %875 = vmatpush1.msra.mxu0 0.0
    %876 = vmatprep.subr.mxu0 0.0
    %877 = vmatpush1.msra.mxu0 0.0
    %878 = vmatprep.subr.mxu0 0.0
    %879 = vmatpush1.msra.mxu0 0.0
    %880 = vmatprep.subr.mxu0 0.0
    %881 = vmatpush1.msra.mxu0 0.0
    %882 = vmatprep.subr.mxu0 0.0
    %883 = vmatpush1.msra.mxu0 0.0
    %884 = vmatprep.subr.mxu0 0.0
    %885 = vmatpush1.msra.mxu0 0.0
    %886 = vmatprep.mubr.f32.mxu0 0.0
    %887 = vmatmul.mubr.f32.gmra.mrb[0].mxu0 %v817
    %v888 = vpop.f32.mrb[0].mxu0
    %v889 = vadd.f32 %v240, %v888
    %v890 = vpop.f32.mrb[0].mxu0
    %891 = vmatprep.mubr.f32.mxu0 0.0
    %892 = vmatmul.mubr.f32.gmra.mrb[0].mxu0 %v820
    %v893 = vpop.f32.mrb[0].mxu0
    %v894 = vadd.f32 %v245, %v893
    %v895 = vpop.f32.mrb[0].mxu0
    %896 = vdwg.mxu0
    %v897 = vld [vmem:[%s2] sm:$0xff]
    %v898 = vld [vmem:[%s2 + $0x8] sm:$0xff]
    %v899 = vld [vmem:[%s2 + $0x10] sm:$0xff]
    %v900 = vld [vmem:[%s2 + $0x18] sm:$0xff]
    %v901 = vld [vmem:[%s2 + $0x20] sm:$0xff]
    %v902 = vld [vmem:[%s2 + $0x28] sm:$0xff]
    %v903 = vld [vmem:[%s2 + $0x30] sm:$0xff]
    %v904 = vld [vmem:[%s2 + $0x38] sm:$0xff]
    %v905 = vld [vmem:[%s2 + $0x40] sm:$0xff]
    %v906 = vld [vmem:[%s2 + $0x48] sm:$0xff]
    %v907 = vld [vmem:[%s2 + $0x50] sm:$0xff]
    %v908 = vld [vmem:[%s2 + $0x58] sm:$0xff]
    %v909 = vld [vmem:[%s2 + $0x60] sm:$0xff]
    %v910 = vld [vmem:[%s2 + $0x68] sm:$0xff]
    %v911 = vld [vmem:[%s2 + $0x70] sm:$0xff]
    %v912 = vld [vmem:[%s2 + $0x78] sm:$0xff]
    %914 = vset.pattern.permute.xlu0 0
    %915 = vperm.xlu0 %914, %v897
    %v916 = vpop.permute.xlu0 %915
    %919 = vset.pattern.permute.xlu0 0
    %920 = vperm.xlu0 %919, %v898
    %v921 = vpop.permute.xlu0 %920
    %924 = vset.pattern.permute.xlu0 0
    %925 = vperm.xlu0 %924, %v899
    %v926 = vpop.permute.xlu0 %925
    %929 = vset.pattern.permute.xlu0 0
    %930 = vperm.xlu0 %929, %v900
    %v931 = vpop.permute.xlu0 %930
    %934 = vset.pattern.permute.xlu0 0
    %935 = vperm.xlu0 %934, %v901
    %v936 = vpop.permute.xlu0 %935
    %939 = vset.pattern.permute.xlu0 0
    %940 = vperm.xlu0 %939, %v902
    %v941 = vpop.permute.xlu0 %940
    %944 = vset.pattern.permute.xlu0 0
    %945 = vperm.xlu0 %944, %v903
    %v946 = vpop.permute.xlu0 %945
    %949 = vset.pattern.permute.xlu0 0
    %950 = vperm.xlu0 %949, %v904
    %v951 = vpop.permute.xlu0 %950
    %954 = vset.pattern.permute.xlu0 0
    %955 = vperm.xlu0 %954, %v905
    %v956 = vpop.permute.xlu0 %955
    %959 = vset.pattern.permute.xlu0 0
    %960 = vperm.xlu0 %959, %v906
    %v961 = vpop.permute.xlu0 %960
    %964 = vset.pattern.permute.xlu0 0
    %965 = vperm.xlu0 %964, %v907
    %v966 = vpop.permute.xlu0 %965
    %969 = vset.pattern.permute.xlu0 0
    %970 = vperm.xlu0 %969, %v908
    %v971 = vpop.permute.xlu0 %970
    %974 = vset.pattern.permute.xlu0 0
    %975 = vperm.xlu0 %974, %v909
    %v976 = vpop.permute.xlu0 %975
    %979 = vset.pattern.permute.xlu0 0
    %980 = vperm.xlu0 %979, %v910
    %v981 = vpop.permute.xlu0 %980
    %984 = vset.pattern.permute.xlu0 0
    %985 = vperm.xlu0 %984, %v911
    %v986 = vpop.permute.xlu0 %985
    %989 = vset.pattern.permute.xlu0 0
    %990 = vperm.xlu0 %989, %v912
    %v991 = vpop.permute.xlu0 %990
    %v993 = vmul.f32 %v322, %v916
    %v994 = vmul.f32 %v327, %v921
    %v995 = vmul.f32 %v403, %v926
    %v996 = vmul.f32 %v408, %v931
    %v997 = vmul.f32 %v484, %v936
    %v998 = vmul.f32 %v489, %v941
    %v999 = vmul.f32 %v565, %v946
    %v1000 = vmul.f32 %v570, %v951
    %v1001 = vmul.f32 %v646, %v956
    %v1002 = vmul.f32 %v651, %v961
    %v1003 = vmul.f32 %v727, %v966
    %v1004 = vmul.f32 %v732, %v971
    %v1005 = vmul.f32 %v808, %v976
    %v1006 = vmul.f32 %v813, %v981
    %v1007 = vmul.f32 %v889, %v986
    %v1008 = vmul.f32 %v894, %v991
    %1009 = vst [vmem:[#allocation2] sm:$0xff] %v993
    %1010 = vst [vmem:[#allocation2 + $0x8] sm:$0xff] %v994
    %1011 = vst [vmem:[#allocation2 + $0x10] sm:$0xff] %v995
    %1012 = vst [vmem:[#allocation2 + $0x18] sm:$0xff] %v996
    %1013 = vst [vmem:[#allocation2 + $0x20] sm:$0xff] %v997
    %1014 = vst [vmem:[#allocation2 + $0x28] sm:$0xff] %v998
    %1015 = vst [vmem:[#allocation2 + $0x30] sm:$0xff] %v999
    %1016 = vst [vmem:[#allocation2 + $0x38] sm:$0xff] %v1000
    %1017 = vst [vmem:[#allocation2 + $0x40] sm:$0xff] %v1001
    %1018 = vst [vmem:[#allocation2 + $0x48] sm:$0xff] %v1002
    %1019 = vst [vmem:[#allocation2 + $0x50] sm:$0xff] %v1003
    %1020 = vst [vmem:[#allocation2 + $0x58] sm:$0xff] %v1004
    %1021 = vst [vmem:[#allocation2 + $0x60] sm:$0xff] %v1005
    %1022 = vst [vmem:[#allocation2 + $0x68] sm:$0xff] %v1006
    %1023 = vst [vmem:[#allocation2 + $0x70] sm:$0xff] %v1007
    %1024 = vst [vmem:[#allocation2 + $0x78] sm:$0xff] %v1008
    // Predicated region
    $region18: #{message_passing.1} parent=1 // pred_check
      _
    $region19: #{message_passing.1} parent=1 // pred_check_branch
      %1026 = sbr.rel (0) target = $region21
    $region20: #{message_passing.1} parent=1 // pred_region
      %s1028 = ssub.s32 2048, 2048
      %1029 = vsyncadd [#allocation3], %s1028
      %s1030 = sshll.u32 [#allocation2], 4
      %s1031 = int_to_ptr.vmem [resolvable:$true] %s1030
      %1036 = dma.vmem_to_hbm [thread:$0]  %s1031, 2048, %s4, [#allocation3], 128, 128, 8
    $region21: #{message_passing.1} parent=1 // pred_fallthru
      _
    // Predicated region
    $region22: #{message_passing.1} parent=1 // pred_check
      _
    $region23: #{message_passing.1} parent=1 // pred_check_branch
      %1038 = sbr.rel (0) target = $region25
    $region24: #{message_passing.1} parent=1 // pred_region
      %1039 = dma.done [#allocation3], 2048
    $region25: #{message_passing.1} parent=1 // pred_fallthru
      _
    %1040 = vsyncpa [#allocation3], 1

</llo_original>
